<compile_context>
chip_gen: v6e
topology: v6e:2x2x1
jax: 0.10.0
libtpu: 0.0.40
codegen_flags: <defaults>
</compile_context>

<pallas_src>
import functools

import jax
import jax.numpy as jnp
from jax.experimental import pallas as pl
from jax.experimental.pallas import tpu as pltpu


def conv_d_kernel(x_ref, w_ref, gb_ref, o_ref, xpad_ref, *,
                  K, stride, padding, L, L_out):
    # x_ref:    (bt, C_in, L)       raw input tile, original dtype
    # w_ref:    (C_out, K*C_in)     folded conv weights (bf16), (k, c) column order
    # gb_ref:   (2, C_out, 1)       packed [gamma; beta] (f32)
    # o_ref:    (bt, C_out, L_out)  NCL output tile (lanes = L_out)
    # xpad_ref: (bt, C_in, L_pad)   bf16 VMEM halo scratch
    bt, C_in, _ = x_ref.shape

    # In-kernel halo: zero the two edge strips (tiny masked stores, done every step
    # so the kernel stays correct under "parallel"/megacore execution), then drop
    # the fresh input tile into the middle.  No wrapper pad/cast pass over x.
    if padding > 0:
        edge = jnp.zeros((bt, C_in, padding), xpad_ref.dtype)
        xpad_ref[:, :, :padding] = edge
        xpad_ref[:, :, padding + L:] = edge
    xpad_ref[:, :, padding:padding + L] = x_ref[...].astype(xpad_ref.dtype)

    w = w_ref[...]          # weight-stationary (C_out, K*C_in)
    gamma = gb_ref[0]       # (C_out, 1)
    beta = gb_ref[1]        # (C_out, 1)

    for b in range(bt):     # bt is small and static
        # Fold all K taps into the contraction: stack K shifted (C_in, L_out)
        # windows of the padded input along the contraction axis.
        taps = []
        for k in range(K):
            if stride == 1:
                taps.append(xpad_ref[b, :, k:k + L_out])
            else:
                # TODO(synk): lane-strided read; a contiguous slice + subsample
                # would avoid gather-style lowering on some Mosaic versions.
                taps.append(xpad_ref[b, :, pl.ds(k, L_out, stride=stride)])
        xk = jnp.concatenate(taps, axis=0)                         # (K*C_in, L_out) bf16

        # One weight-stationary MXU matmul per sample, f32 accumulation.
        acc = jnp.dot(w, xk, preferred_element_type=jnp.float32)   # (C_out, L_out) f32
        # Conv bias intentionally omitted: cancelled exactly by the mean subtraction.

        # Fused InstanceNorm1d (biased variance, eps=1e-5) + affine + LeakyReLU(0.2).
        mean = jnp.mean(acc, axis=-1, keepdims=True)
        d = acc - mean
        var = jnp.mean(d * d, axis=-1, keepdims=True)
        scale = gamma * jax.lax.rsqrt(var + 1e-5)
        y = d * scale + beta
        o_ref[b] = jnp.where(y >= 0.0, y, 0.2 * y).astype(o_ref.dtype)


def conv_d_forward(x, weight, bias, gamma, beta, *, kernel_size, padding, stride):
    """x: (N, C_in, L). weight: (C_out, C_in, K). Returns (N, C_out, L_out) in NCL."""
    N, C_in, L = x.shape
    C_out = weight.shape[0]
    K = kernel_size
    L_pad = L + 2 * padding
    L_out = (L_pad - K) // stride + 1

    # ---- tiny glue only (no full-x HBM pass): fold weights, pack gamma/beta ----
    # Column order (k, c) matches the in-kernel tap stacking.
    w_fold = jnp.transpose(weight, (0, 2, 1)).reshape(C_out, K * C_in)
    w_fold = w_fold.astype(jnp.bfloat16)
    gb = jnp.stack([gamma.astype(jnp.float32),
                    beta.astype(jnp.float32)]).reshape(2, C_out, 1)
    del bias  # cancelled exactly by InstanceNorm's mean subtraction

    # ---- VMEM-aware batch-tile selection (padded tile shapes) ----
    def rnd(v, m):
        return ((v + m - 1) // m) * m

    x_bytes = x.dtype.itemsize

    def block_bytes(bt):
        x_blk = bt * rnd(C_in, 8) * rnd(L, 128) * x_bytes           # input tile
        o_blk = bt * rnd(C_out, 8) * rnd(L_out, 128) * 4            # output tile (f32)
        xpad = bt * rnd(C_in, 16) * rnd(L_pad, 128) * 2             # bf16 halo scratch
        xim = rnd(K * C_in, 16) * rnd(L_out, 128) * 2               # folded-tap operand
        tmp = 4 * rnd(C_out, 8) * rnd(L_out, 128) * 4               # acc/d/y temporaries
        wgb = rnd(C_out, 16) * rnd(K * C_in, 128) * 2 + 2 * rnd(C_out, 8) * 128 * 4
        return 2 * (x_blk + o_blk + wgb) + xpad + xim + tmp         # in/out double-buffered

    vmem_cap = 64 << 20
    try:
        vmem_cap = int(pltpu.get_tpu_info().vmem_capacity_bytes)
    except Exception:
        pass
    budget = vmem_cap // 3

    divisors = [d for d in range(1, N + 1) if N % d == 0]
    fitting = [d for d in divisors if block_bytes(d) <= budget] or [1]
    # Keep >= 2 grid steps when possible so both v7x TensorCores get work.
    multi_step = [d for d in fitting if N // d >= 2]
    bt = max(multi_step) if multi_step else max(fitting)
    # TODO(synk): for very large L even bt=1 may exceed VMEM; an L-tile grid axis
    # with streamed sum/sumsq statistics would be needed in that regime.

    need = block_bytes(bt)
    vmem_limit = int(min(vmem_cap * 3 // 4, max(32 << 20, 2 * need + (4 << 20))))
    vmem_limit = max(vmem_limit, min(need + (4 << 20), vmem_cap))

    kernel = functools.partial(conv_d_kernel, K=K, stride=stride,
                               padding=padding, L=L, L_out=L_out)

    return pl.pallas_call(
        kernel,
        out_shape=jax.ShapeDtypeStruct((N, C_out, L_out), jnp.float32),
        grid_spec=pltpu.PrefetchScalarGridSpec(
            num_scalar_prefetch=0,
            grid=(N // bt,),
            in_specs=[
                pl.BlockSpec((bt, C_in, L), lambda n: (n, 0, 0)),
                pl.BlockSpec((C_out, K * C_in), lambda n: (0, 0)),
                pl.BlockSpec((2, C_out, 1), lambda n: (0, 0, 0)),
            ],
            out_specs=pl.BlockSpec((bt, C_out, L_out), lambda n: (n, 0, 0)),
            scratch_shapes=[pltpu.VMEM((bt, C_in, L_pad), jnp.bfloat16)],
        ),
        compiler_params=pltpu.CompilerParams(
            dimension_semantics=("parallel",),
            vmem_limit_bytes=int(vmem_limit),
        ),
    )(x, w_fold, gb)


if __name__ == "__main__":
    # Module hyperparameters (small, consistent with Conv_D.__init__)
    in_channels, out_channels = 4, 8
    kernel_size, padding, stride = 3, 1, 1
    N, L = 2, 16

    key = jax.random.PRNGKey(0)
    k_x, k_w, k_b, k_g, k_be = jax.random.split(key, 5)

    fan_in = in_channels * kernel_size
    bound = 1.0 / (fan_in ** 0.5)
    weight = jax.random.uniform(k_w, (out_channels, in_channels, kernel_size),
                                jnp.float32, -bound, bound)
    bias = jax.random.uniform(k_b, (out_channels,), jnp.float32, -bound, bound)
    gamma = jnp.ones((out_channels,), jnp.float32) + 0.1 * jax.random.normal(k_g, (out_channels,))
    beta = 0.1 * jax.random.normal(k_be, (out_channels,))

    x = jax.random.normal(k_x, (N, in_channels, L), jnp.float32)

    fwd = jax.jit(functools.partial(conv_d_forward,
                                    kernel_size=kernel_size,
                                    padding=padding,
                                    stride=stride))
    y = fwd(x, weight, bias, gamma, beta)
    jax.block_until_ready(y)

    # Pure-JAX f32 reference with full PyTorch semantics (including the conv bias,
    # which InstanceNorm's mean subtraction cancels -- verifies the bias-drop
    # optimization is exact).  Tolerance accounts for bf16 matmul operands.
    conv_ref = jax.lax.conv_general_dilated(
        x, weight, window_strides=(stride,), padding=[(padding, padding)],
        dimension_numbers=("NCH", "OIH", "NCH")) + bias[None, :, None]
    mean = conv_ref.mean(axis=2, keepdims=True)
    var = ((conv_ref - mean) ** 2).mean(axis=2, keepdims=True)
    norm_ref = (conv_ref - mean) * jax.lax.rsqrt(var + 1e-5)
    norm_ref = norm_ref * gamma[None, :, None] + beta[None, :, None]
    y_ref = jnp.where(norm_ref >= 0, norm_ref, 0.2 * norm_ref)

    L_out = (L + 2 * padding - kernel_size) // stride + 1
    assert y.shape == (N, out_channels, L_out), y.shape
    assert jnp.allclose(y, y_ref, atol=3e-2, rtol=3e-2), \
        float(jnp.max(jnp.abs(y - y_ref)))

    print("KERNEL_OK")
</pallas_src>

<mosaic_0001>
module attributes {stable_mosaic.version = 11 : i64} {
  func.func @conv_d_kernel(%arg0: i32, %arg1: memref<1x4x16xf32, #tpu.memory_space<vmem>>, %arg2: memref<8x12xbf16, #tpu.memory_space<vmem>>, %arg3: memref<2x8x1xf32, #tpu.memory_space<vmem>>, %arg4: memref<1x8x16xf32, #tpu.memory_space<vmem>>, %arg5: memref<1x4x18xbf16, #tpu.memory_space<vmem>>) attributes {dimension_semantics = [#tpu.dimension_semantics<parallel>], iteration_bounds = array<i64: 2>, scalar_prefetch = 0 : i64, scratch_operands = 1 : i64, tpu.core_type = #tpu.core_type<tc>, window_params = [{transform_indices = @transform_0, window_bounds = array<i64: 1, 4, 16>}, {pipeline_mode = #tpu.pipeline_mode<synchronous>, transform_indices = @transform_1, window_bounds = array<i64: 8, 12>}, {pipeline_mode = #tpu.pipeline_mode<synchronous>, transform_indices = @transform_2, window_bounds = array<i64: 2, 8, 1>}, {transform_indices = @transform_3, window_bounds = array<i64: 1, 8, 16>}]} {
    %cst = arith.constant 0.000000e+00 : bf16
    %0 = vector.broadcast %cst : bf16 to vector<1x4x1xbf16>
    %c0 = arith.constant 0 : index
    %c0_0 = arith.constant 0 : index
    %c0_1 = arith.constant 0 : index
    %1 = vector.load %arg5[%c0, %c0_0, %c0_1] : memref<1x4x18xbf16, #tpu.memory_space<vmem>>, vector<1x4x1xbf16>
    tpu.vector_store %arg5[%c0, %c0_0, %c0_1], %0 {strides = array<i32>} : memref<1x4x18xbf16, #tpu.memory_space<vmem>>, vector<1x4x1xbf16>,
    %c0_2 = arith.constant 0 : index
    %c0_3 = arith.constant 0 : index
    %c17 = arith.constant 17 : index
    %2 = vector.load %arg5[%c0_2, %c0_3, %c17] : memref<1x4x18xbf16, #tpu.memory_space<vmem>>, vector<1x4x1xbf16>
    tpu.vector_store %arg5[%c0_2, %c0_3, %c17], %0 {strides = array<i32>} : memref<1x4x18xbf16, #tpu.memory_space<vmem>>, vector<1x4x1xbf16>,
    %c0_4 = arith.constant 0 : index
    %c0_5 = arith.constant 0 : index
    %c0_6 = arith.constant 0 : index
    %3 = vector.load %arg1[%c0_4, %c0_5, %c0_6] : memref<1x4x16xf32, #tpu.memory_space<vmem>>, vector<1x4x16xf32>
    %4 = arith.truncf %3 : vector<1x4x16xf32> to vector<1x4x16xbf16>
    %c0_7 = arith.constant 0 : index
    %c0_8 = arith.constant 0 : index
    %c1 = arith.constant 1 : index
    %5 = vector.load %arg5[%c0_7, %c0_8, %c1] : memref<1x4x18xbf16, #tpu.memory_space<vmem>>, vector<1x4x16xbf16>
    tpu.vector_store %arg5[%c0_7, %c0_8, %c1], %4 {strides = array<i32>} : memref<1x4x18xbf16, #tpu.memory_space<vmem>>, vector<1x4x16xbf16>,
    %c0_9 = arith.constant 0 : index
    %c0_10 = arith.constant 0 : index
    %6 = vector.load %arg2[%c0_9, %c0_10] : memref<8x12xbf16, #tpu.memory_space<vmem>>, vector<8x12xbf16>
    %c0_11 = arith.constant 0 : index
    %c0_12 = arith.constant 0 : index
    %c0_13 = arith.constant 0 : index
    %7 = vector.load %arg3[%c0_11, %c0_12, %c0_13] : memref<2x8x1xf32, #tpu.memory_space<vmem>>, vector<1x8x1xf32>
    %8 = vector.shape_cast %7 : vector<1x8x1xf32> to vector<8x1xf32>
    %c1_14 = arith.constant 1 : index
    %c0_15 = arith.constant 0 : index
    %c0_16 = arith.constant 0 : index
    %9 = vector.load %arg3[%c1_14, %c0_15, %c0_16] : memref<2x8x1xf32, #tpu.memory_space<vmem>>, vector<1x8x1xf32>
    %10 = vector.shape_cast %9 : vector<1x8x1xf32> to vector<8x1xf32>
    %c0_17 = arith.constant 0 : index
    %c0_18 = arith.constant 0 : index
    %c0_19 = arith.constant 0 : index
    %11 = vector.load %arg5[%c0_17, %c0_18, %c0_19] : memref<1x4x18xbf16, #tpu.memory_space<vmem>>, vector<1x4x16xbf16>
    %12 = vector.shape_cast %11 : vector<1x4x16xbf16> to vector<4x16xbf16>
    %c0_20 = arith.constant 0 : index
    %c0_21 = arith.constant 0 : index
    %c1_22 = arith.constant 1 : index
    %13 = vector.load %arg5[%c0_20, %c0_21, %c1_22] : memref<1x4x18xbf16, #tpu.memory_space<vmem>>, vector<1x4x16xbf16>
    %14 = vector.shape_cast %13 : vector<1x4x16xbf16> to vector<4x16xbf16>
    %c0_23 = arith.constant 0 : index
    %c0_24 = arith.constant 0 : index
    %c2 = arith.constant 2 : index
    %15 = vector.load %arg5[%c0_23, %c0_24, %c2] : memref<1x4x18xbf16, #tpu.memory_space<vmem>>, vector<1x4x16xbf16>
    %16 = vector.shape_cast %15 : vector<1x4x16xbf16> to vector<4x16xbf16>
    %17 = tpu.concatenate %12, %14, %16 in 0 : vector<4x16xbf16>, vector<4x16xbf16>, vector<4x16xbf16> -> vector<12x16xbf16>
    %cst_25 = arith.constant dense<0.000000e+00> : vector<8x16xf32>
    %18 = tpu.matmul %6, %17, %cst_25 {dimension_numbers = #tpu.dot_dimension_numbers<[1], [0], [0], [1], [0, 0, 1, 1], [], []>} : vector<8x12xbf16>, vector<12x16xbf16>, vector<8x16xf32> -> vector<8x16xf32>
    %cst_26 = arith.constant dense<0.000000e+00> : vector<8xf32>
    %19 = vector.multi_reduction <add>, %18, %cst_26 [1] : vector<8x16xf32> to vector<8xf32>
    %20 = vector.shape_cast %19 : vector<8xf32> to vector<8x1xf32>
    %cst_27 = arith.constant 1.600000e+01 : f32
    %21 = vector.broadcast %cst_27 : f32 to vector<8x1xf32>
    %22 = arith.divf %20, %21 : vector<8x1xf32>
    %23 = vector.broadcast %22 : vector<8x1xf32> to vector<8x16xf32>
    %24 = arith.subf %18, %23 : vector<8x16xf32>
    %25 = arith.mulf %24, %24 : vector<8x16xf32>
    %cst_28 = arith.constant dense<0.000000e+00> : vector<8xf32>
    %26 = vector.multi_reduction <add>, %25, %cst_28 [1] : vector<8x16xf32> to vector<8xf32>
    %27 = vector.shape_cast %26 : vector<8xf32> to vector<8x1xf32>
    %cst_29 = arith.constant 1.600000e+01 : f32
    %28 = vector.broadcast %cst_29 : f32 to vector<8x1xf32>
    %29 = arith.divf %27, %28 : vector<8x1xf32>
    %cst_30 = arith.constant 9.99999974E-6 : f32
    %30 = vector.broadcast %cst_30 : f32 to vector<8x1xf32>
    %31 = arith.addf %29, %30 : vector<8x1xf32>
    %32 = math.rsqrt %31 : vector<8x1xf32>
    %33 = arith.mulf %8, %32 : vector<8x1xf32>
    %34 = vector.broadcast %33 : vector<8x1xf32> to vector<8x16xf32>
    %35 = arith.mulf %24, %34 : vector<8x16xf32>
    %36 = vector.broadcast %10 : vector<8x1xf32> to vector<8x16xf32>
    %37 = arith.addf %35, %36 : vector<8x16xf32>
    %cst_31 = arith.constant 0.000000e+00 : f32
    %38 = vector.broadcast %cst_31 : f32 to vector<8x16xf32>
    %39 = arith.cmpf oge, %37, %38 : vector<8x16xf32>
    %cst_32 = arith.constant 2.000000e-01 : f32
    %40 = vector.broadcast %cst_32 : f32 to vector<8x16xf32>
    %41 = arith.mulf %40, %37 : vector<8x16xf32>
    %42 = arith.select %39, %37, %41 : vector<8x16xi1>, vector<8x16xf32>
    %c0_33 = arith.constant 0 : index
    %c0_34 = arith.constant 0 : index
    %c0_35 = arith.constant 0 : index
    %43 = vector.load %arg4[%c0_33, %c0_34, %c0_35] : memref<1x8x16xf32, #tpu.memory_space<vmem>>, vector<1x8x16xf32>
    %44 = vector.shape_cast %43 : vector<1x8x16xf32> to vector<8x16xf32>
    %45 = vector.shape_cast %42 : vector<8x16xf32> to vector<1x8x16xf32>
    tpu.vector_store %arg4[%c0_33, %c0_34, %c0_35], %45 {strides = array<i32>} : memref<1x8x16xf32, #tpu.memory_space<vmem>>, vector<1x8x16xf32>,
    return
  }
  func.func @transform_0(%arg0: i32) -> (i32, i32, i32) {
    %c0_i32 = arith.constant 0 : i32
    %c0_i32_0 = arith.constant 0 : i32
    %c0_i32_1 = arith.constant 0 : i32
    return %arg0, %c0_i32, %c0_i32_0 : i32, i32, i32
  }
  func.func @transform_1(%arg0: i32) -> (i32, i32) {
    %c0_i32 = arith.constant 0 : i32
    %c0_i32_0 = arith.constant 0 : i32
    %c0_i32_1 = arith.constant 0 : i32
    return %c0_i32, %c0_i32_0 : i32, i32
  }
  func.func @transform_2(%arg0: i32) -> (i32, i32, i32) {
    %c0_i32 = arith.constant 0 : i32
    %c0_i32_0 = arith.constant 0 : i32
    %c0_i32_1 = arith.constant 0 : i32
    %c0_i32_2 = arith.constant 0 : i32
    return %c0_i32, %c0_i32_0, %c0_i32_1 : i32, i32, i32
  }
  func.func @transform_3(%arg0: i32) -> (i32, i32, i32) {
    %c0_i32 = arith.constant 0 : i32
    %c0_i32_0 = arith.constant 0 : i32
    %c0_i32_1 = arith.constant 0 : i32
    return %arg0, %c0_i32, %c0_i32_0 : i32, i32, i32
  }
}

</mosaic_0001>

<llo_original>
// kernel: conv_d_forward.1
$region0: #{conv_d_forward.1}
  #allocation0 [shape = 'u32[]', space=smem, size = 0x4, offset = 0x4, fixed_abs, tag = 'smem constant byte address 0x4 - core index']
  #allocation1 [shape = 'u32[144,128]{1,0:T(1,128)}', space=vmem, size = 0x12000, scoped, tag = 'internal scratch']
  #allocation2 [shape = 'bf16[1,4,18]{2,1,0:T(4,128)(2,1)}', space=vmem, size = 0x400, scoped, tag = 'scratch operand']
  %s0 = inlined_call_operand.vmem [shape: f32[2,4,16], index: 0, kind: input, shape index: {}]
  %s1 = inlined_call_operand.vmem [shape: bf16[8,12], index: 1, kind: input, shape index: {}]
  %s2 = inlined_call_operand.vmem [shape: f32[2,8,1], index: 2, kind: input, shape index: {}]
  %s3 = inlined_call_operand.hbm [shape: f32[2,8,16], index: 3, kind: output, shape index: {}]
  %s4 = sld [smem:[#allocation0]]
  $region45: #{conv_d_forward.1} parent=0
    _
  %s6 = ssub.s32 1, %s4
  %s7 = scalar_select 0, %s6, %s4
  $region1: #{conv_d_forward.1} parent=0
    #allocation3 [shape = 'u8[8192]{0}', space=vmem, size = 0x2000, scoped, tag = 'output window, operand 0']
    #allocation4 [shape = 's32[2]{0}', space=sflag, size = 0x8, scoped, tag = 'scoped memory for conv_d_forward.1']
    %8 = vsyncpa [#allocation4], 0
    %s9 = scalar_lea.sflag [#allocation4], 1
    %10 = vsyncpa %s9, 0
    loop: start=0, step=1, limit=4
    $region2: #{conv_d_forward.1} parent=1 // loop_pre_header
      _
    $region3: #{conv_d_forward.1} parent=1 // loop_header
      %s12 = sphi 0, %s16
      %p13 = scmp.ge.s32.totalorder %s12, 4
      %s22 = sphi 0, %s24
      %s25 = sphi 0, %s22
      %s26 = sphi 0, %s25
      %s42 = sphi 0, %s26
      %s46 = sphi 0, %s46
      %s48 = sphi 0, %s46
      %s49 = sphi 0, %s48
      %s63 = sphi 0, %s49
      %s67 = sphi 0, %s67
      %s69 = sphi 0, %s67
      %s70 = sphi 0, %s69
      %s84 = sphi 0, %s70
      %s90 = sphi 0, %s92
      %s93 = sphi 0, %s90
      %s94 = sphi 0, %s93
      %s110 = sphi 0, %s94
    $region4: #{conv_d_forward.1} parent=1 // loop_header_branch
      %15 = sbr.rel (%p13) target = $region8
    $region5: #{conv_d_forward.1} parent=1 // loop_body
      %s17 = ssub.s32 %s12, 1
      %s18 = ssub.s32 %s12, 2
      %s19 = sadd.s32 %s12, 1
      %s20 = ssub.s32 %s12, %s19
      %p21 = scmp.eq.s32.totalorder %s20, 0
      %s23 = sadd.s32 %s22, 1
      %s24 = scalar_select %p21, %s22, %s23
      %p27 = pneg %p21
      %p28 = scmp.eq.s32.totalorder %s12, 1
      %p29 = por %p27, %p28
      %p30 = scmp.ne.s32.totalorder %s22, %s25
      %p31 = scmp.eq.s32.totalorder %s12, 0
      %p32 = por %p30, %p31
      %p33 = scmp.ne.s32.totalorder %s22, %s25
      %p34 = scmp.eq.s32.totalorder %s17, 1
      %p35 = por %p33, %p34
      %p36 = scmp.ne.s32.totalorder %s25, %s26
      %p37 = scmp.eq.s32.totalorder %s17, 0
      %p38 = por %p36, %p37
      %p39 = scmp.ne.s32.totalorder %s25, %s26
      %p40 = scmp.eq.s32.totalorder %s18, 1
      %p41 = por %p39, %p40
      %p43 = scmp.ne.s32.totalorder %s26, %s42
      %p44 = scmp.eq.s32.totalorder %s18, 0
      %p45 = por %p43, %p44
      %s47 = sadd.s32 %s46, 1
      %p50 = scmp.eq.s32.totalorder %s12, 1
      %p51 = scmp.ne.s32.totalorder %s46, %s48
      %p52 = scmp.eq.s32.totalorder %s12, 0
      %p53 = por %p51, %p52
      %p54 = scmp.ne.s32.totalorder %s46, %s48
      %p55 = scmp.eq.s32.totalorder %s17, 1
      %p56 = por %p54, %p55
      %p57 = scmp.ne.s32.totalorder %s48, %s49
      %p58 = scmp.eq.s32.totalorder %s17, 0
      %p59 = por %p57, %p58
      %p60 = scmp.ne.s32.totalorder %s48, %s49
      %p61 = scmp.eq.s32.totalorder %s18, 1
      %p62 = por %p60, %p61
      %p64 = scmp.ne.s32.totalorder %s49, %s63
      %p65 = scmp.eq.s32.totalorder %s18, 0
      %p66 = por %p64, %p65
      %s68 = sadd.s32 %s67, 1
      %p71 = scmp.eq.s32.totalorder %s12, 1
      %p72 = scmp.ne.s32.totalorder %s67, %s69
      %p73 = scmp.eq.s32.totalorder %s12, 0
      %p74 = por %p72, %p73
      %p75 = scmp.ne.s32.totalorder %s67, %s69
      %p76 = scmp.eq.s32.totalorder %s17, 1
      %p77 = por %p75, %p76
      %p78 = scmp.ne.s32.totalorder %s69, %s70
      %p79 = scmp.eq.s32.totalorder %s17, 0
      %p80 = por %p78, %p79
      %p81 = scmp.ne.s32.totalorder %s69, %s70
      %p82 = scmp.eq.s32.totalorder %s18, 1
      %p83 = por %p81, %p82
      %p85 = scmp.ne.s32.totalorder %s70, %s84
      %p86 = scmp.eq.s32.totalorder %s18, 0
      %p87 = por %p85, %p86
      %s88 = ssub.s32 %s12, %s19
      %p89 = scmp.eq.s32.totalorder %s88, 0
      %s91 = sadd.s32 %s90, 1
      %s92 = scalar_select %p89, %s90, %s91
      %p95 = pneg %p89
      %p96 = scmp.eq.s32.totalorder %s12, 1
      %p97 = por %p95, %p96
      %p98 = scmp.ne.s32.totalorder %s90, %s93
      %p99 = scmp.eq.s32.totalorder %s12, 0
      %p100 = por %p98, %p99
      %p101 = scmp.ne.s32.totalorder %s90, %s93
      %p102 = scmp.eq.s32.totalorder %s17, 1
      %p103 = por %p101, %p102
      %p104 = scmp.ne.s32.totalorder %s93, %s94
      %p105 = scmp.eq.s32.totalorder %s17, 0
      %p106 = por %p104, %p105
      %p107 = scmp.ne.s32.totalorder %s93, %s94
      %p108 = scmp.eq.s32.totalorder %s18, 1
      %p109 = por %p107, %p108
      %p111 = scmp.ne.s32.totalorder %s94, %s110
      %p112 = scmp.eq.s32.totalorder %s18, 0
      %p113 = por %p111, %p112
      %p114 = scmp.le.s32.totalorder 1, %s12
      %p115 = scmp.lt.s32.totalorder %s12, 3
      %p116 = pnand %p114, %p115
      %p117 = pneg %p116
      // Predicated region
      $region9: #{conv_d_forward.1} parent=5 // pred_check
        _
      $region10: #{conv_d_forward.1} parent=5 // pred_check_branch
        %119 = sbr.rel (%p116) target = $region12
      $region11: #{conv_d_forward.1} parent=5 // pred_region
        %s120 = ssub.s32 %s12, 1
        // Predicated region
        $region13: #{conv_d_forward.1} parent=11 // pred_check
          %p121 = pneg %p59
        $region14: #{conv_d_forward.1} parent=11 // pred_check_branch
          %123 = sbr.rel (%p121) target = $region16
        $region15: #{conv_d_forward.1} parent=11 // pred_region
          _
        $region16: #{conv_d_forward.1} parent=11 // pred_fallthru
          _
        // Predicated region
        $region17: #{conv_d_forward.1} parent=11 // pred_check
          %p124 = pneg %p80
        $region18: #{conv_d_forward.1} parent=11 // pred_check_branch
          %126 = sbr.rel (%p124) target = $region20
        $region19: #{conv_d_forward.1} parent=11 // pred_region
          _
        $region20: #{conv_d_forward.1} parent=11 // pred_fallthru
          _
      $region12: #{conv_d_forward.1} parent=5 // pred_fallthru
        _
      %p127 = scmp.lt.s32.totalorder %s12, 2
      // Predicated region
      $region21: #{conv_d_forward.1} parent=5 // pred_check
        %p128 = pneg %p127
      $region22: #{conv_d_forward.1} parent=5 // pred_check_branch
        %130 = sbr.rel (%p128) target = $region24
      $region23: #{conv_d_forward.1} parent=5 // pred_region
        // Predicated region
        $region25: #{conv_d_forward.1} parent=23 // pred_check
          %p131 = pneg %p32
        $region26: #{conv_d_forward.1} parent=23 // pred_check_branch
          %133 = sbr.rel (%p131) target = $region28
        $region27: #{conv_d_forward.1} parent=23 // pred_region
          %p134 = scmp.lt.s32.totalorder %s12, 1
          %s135 = scalar_select %p134, %s12, 1
          %s136 = smul.addr %s135, 4
          %s137 = scalar_lea.vmem %s0, %s136
        $region28: #{conv_d_forward.1} parent=23 // pred_fallthru
          _
      $region24: #{conv_d_forward.1} parent=5 // pred_fallthru
        _
      %p138 = scmp.le.s32.totalorder 1, %s12
      %p139 = scmp.lt.s32.totalorder %s12, 3
      %p140 = pnand %p138, %p139
      %p141 = pneg %p140
      // Predicated region
      $region29: #{conv_d_forward.1} parent=5 // pred_check
        _
      $region30: #{conv_d_forward.1} parent=5 // pred_check_branch
        %143 = sbr.rel (%p140) target = $region32
      $region31: #{conv_d_forward.1} parent=5 // pred_region
        %s144 = ssub.s32 %s12, 1
        %p145 = scmp.lt.s32.totalorder %s17, 1
        %s146 = scalar_select %p145, %s17, 1
        %s147 = smul.addr %s146, 4
        %s148 = scalar_lea.vmem %s0, %s147
        %p149 = pneg %p38
        %p150 = pneg %p35
        %p151 = pneg %p59
        %p152 = pneg %p56
        %p153 = pneg %p80
        %p154 = pneg %p77
        %p155 = pneg %p106
        %p156 = pneg %p103
        %s157 = sand.u32 %s93, 1
        %s158 = scalar_lea.sflag [#allocation4], %s157
        %s159 = sand.u32 %s93, 1
        %s160 = smul.addr %s159, 8
        %s161 = scalar_lea.vmem [#allocation3], %s160
        %p162 = scmp.lt.s32.totalorder %s17, 1
        %s163 = scalar_select %p162, %s17, 1
        %s164 = smul.addr %s163, 4
        %s165 = scalar_lea.vmem %s0, %s164
        %vm167 = vcmask 1024
        %168 = vst.msk [vmem:[#allocation2] sm:$0x3] %vm167, 0
        %vm169 = vcmask 140424
        %170 = vst.msk [vmem:[#allocation2] sm:$0x3] %vm169, 0
        %v171 = vld [vmem:[%s165] sm:$0xf]
        %v172 = vpack.c.bf16 %v171, %v171
        %v175 = vunpack.c.l.s4 1983009808
        %v176 = vunpack.c.0.s8 %v175
        %v177 = vlaneseq
        %v178 = vshrl.u32 %v177, 7
        %v179 = vsub.s32 %v176, %v178
        %v180 = vrot.slane %v172, %v179
        %181 = vrot.lane.b32.xlu0 %v180, 1
        %v182 = vpop.permute.xlu0 %181
        %vm184 = vcmask 132104
        %185 = vst.msk [vmem:[#allocation2] sm:$0x3] %vm184, %v182
        %v186 = vld [vmem:[%s1] sm:$0xf]
        %v187 = vld [vmem:[%s2] sm:$0xff]
        %s188 = scalar_lea.vmem %s2, 8
        %v189 = vld [vmem:[%s188] sm:$0xff]
        %v190 = vld [vmem:[#allocation2] sm:$0x3]
        %v192 = vcombine.low %v190, %v190
        %v194 = vunpack.c.l.s4 1983009808
        %v195 = vunpack.c.0.s8 %v194
        %v196 = vlaneseq
        %v197 = vshrl.u32 %v196, 7
        %v198 = vsub.s32 %v195, %v197
        %v199 = vrot.slane %v192, %v198
        %v201 = vunpack.c.l.s4 1983009808
        %v202 = vunpack.c.0.s8 %v201
        %v203 = vlaneseq
        %v204 = vshrl.u32 %v203, 7
        %v205 = vsub.s32 %v202, %v204
        %v206 = vrot.slane %v190, %v205
        %207 = vrot.lane.b32.xlu0 %v199, 127
        %v208 = vpop.permute.xlu0 %207
        %v209 = vcombine.low %v206, %v206
        %210 = vrot.lane.b32.xlu0 %v209, 126
        %v211 = vpop.permute.xlu0 %210
        %vm212 = vcmask 1041408
        %v215 = vsel %vm212, %v190, %v208
        %vm216 = vcmask 1043456
        %v218 = vsel %vm216, %v215, %v211
        %vm219 = vcmask 97280
        %v221 = vsel %vm219, %v186, 0
        %vm223 = vcmask 1045504
        %v224 = vsel %vm223, %v218, 0
        %226 = vmatprep.subr.bf16.mxu0 0
        %227 = vmatpush1.bf16.msra.mxu0 0
        %228 = vmatprep.subr.bf16.mxu0 0
        %229 = vmatpush1.bf16.msra.mxu0 0
        %230 = vmatprep.subr.bf16.mxu0 0
        %231 = vmatpush1.bf16.msra.mxu0 0
        %232 = vmatprep.subr.bf16.mxu0 0
        %233 = vmatpush1.bf16.msra.mxu0 0
        %234 = vmatprep.subr.bf16.mxu0 0
        %235 = vmatpush1.bf16.msra.mxu0 0
        %236 = vmatprep.subr.bf16.mxu0 0
        %237 = vmatpush1.bf16.msra.mxu0 0
        %238 = vmatprep.subr.bf16.mxu0 0
        %239 = vmatpush1.bf16.msra.mxu0 0
        %240 = vmatprep.subr.bf16.mxu0 0
        %241 = vmatpush1.bf16.msra.mxu0 %v224
        %242 = vmatprep.subr.bf16.mxu0 0
        %243 = vmatpush2.bf16.msra.mxu0 0
        %244 = vmatprep.subr.bf16.mxu0 0
        %245 = vmatpush2.bf16.msra.mxu0 0
        %246 = vmatprep.subr.bf16.mxu0 0
        %247 = vmatpush2.bf16.msra.mxu0 0
        %248 = vmatprep.subr.bf16.mxu0 0
        %249 = vmatpush2.bf16.msra.mxu0 0
        %250 = vmatprep.subr.bf16.mxu0 0
        %251 = vmatpush2.bf16.msra.mxu0 0
        %252 = vmatprep.subr.bf16.mxu0 0
        %253 = vmatpush2.bf16.msra.mxu0 0
        %254 = vmatprep.subr.bf16.mxu0 0
        %255 = vmatpush2.bf16.msra.mxu0 0
        %256 = vmatprep.subr.bf16.mxu0 0
        %257 = vmatpush2.bf16.msra.mxu0 0
        %258 = vmatprep.mubr.bf16.mxu0 0
        %259 = vmatmul.mubr.bf16.gmra.mxu0 %v221
        %v260 = vpop.f32.mrf.mxu0
        %v261 = vadd.f32 0.0, %v260
        %v262 = vpop.f32.mrf.mxu0
        %v263 = vpop.f32.mrf.mxu0
        %v264 = vpop.f32.mrf.mxu0
        %265 = vdwg.mxu0
        %vm266 = vcmask 130048
        %v267 = vsel %vm266, %v261, 0.0
        %268 = vadd.xlane.f32.xlu0 %v267
        %v269 = vpop.xlane.xlu0 %268
        %v270 = vrcp.pop 16.0
        %v271 = vmul.f32 %v269, %v270
        %v272 = vsub.f32 %v261, %v271
        %v273 = vmul.f32 %v272, %v272
        %v274 = vsel %vm266, %v273, 0.0
        %275 = vadd.xlane.f32.xlu0 %v274
        %v276 = vpop.xlane.xlu0 %275
        %v277 = vmul.f32 %v276, %v270
        %v278 = vadd.f32 %v277, 1e-05
        %v279 = vrsqrt.pop %v278
        %v280 = vmul.f32 %v187, %v279
        %282 = vset.pattern.permute.xlu0 0
        %283 = vperm.xlu0 %282, %v280
        %v284 = vpop.permute.xlu0 %283
        %v286 = vmul.f32 %v272, %v284
        %288 = vset.pattern.permute.xlu0 0
        %289 = vperm.xlu0 %288, %v189
        %v290 = vpop.permute.xlu0 %289
        %v292 = vadd.f32 %v286, %v290
        %vm293 = vcmp.ge.f32.partialorder %v292, 0.0
        %v294 = vmul.f32 %v292, 0.2
        %v295 = vsel %vm293, %v292, %v294
        %296 = vst.msk [vmem:[%s161] sm:$0xff] %vm266, %v295
        %s297 = sand.u32 %s93, 1
        %s298 = scalar_lea.sflag [#allocation4], %s297
        %s299 = sand.u32 %s93, 1
        %s300 = smul.addr %s299, 8
        %s301 = scalar_lea.vmem [#allocation3], %s300
        // Predicated region
        $region33: #{conv_d_forward.1} parent=31 // pred_check
          %p302 = pneg %p103
        $region34: #{conv_d_forward.1} parent=31 // pred_check_branch
          %304 = sbr.rel (%p302) target = $region36
        $region35: #{conv_d_forward.1} parent=31 // pred_region
          %s306 = ssub.s32 128, 128
          %307 = vsyncadd %s298, %s306
          %s308 = smul.addr %s17, 128
          %s309 = scalar_lea.hbm %s3, %s308
          %s311 = sshll.u32 %s301, 4
          %s312 = int_to_ptr.vmem [resolvable:$true] %s311
          %314 = dma.vmem_to_hbm [thread:$0]  %s312, 128, %s309, %s298
        $region36: #{conv_d_forward.1} parent=31 // pred_fallthru
          _
      $region32: #{conv_d_forward.1} parent=5 // pred_fallthru
        _
      %p315 = scmp.le.s32.totalorder 2, %s12
      // Predicated region
      $region37: #{conv_d_forward.1} parent=5 // pred_check
        %p316 = pneg %p315
      $region38: #{conv_d_forward.1} parent=5 // pred_check_branch
        %318 = sbr.rel (%p316) target = $region40
      $region39: #{conv_d_forward.1} parent=5 // pred_region
        %s319 = ssub.s32 %s12, 2
        // Predicated region
        $region41: #{conv_d_forward.1} parent=39 // pred_check
          %p320 = pneg %p109
        $region42: #{conv_d_forward.1} parent=39 // pred_check_branch
          %322 = sbr.rel (%p320) target = $region44
        $region43: #{conv_d_forward.1} parent=39 // pred_region
          %s323 = sand.u32 %s94, 1
          %s324 = scalar_lea.sflag [#allocation4], %s323
          %s325 = sand.u32 %s94, 1
          %s326 = smul.addr %s325, 8
          %s327 = scalar_lea.vmem [#allocation3], %s326
          %328 = dma.done %s324, 128
        $region44: #{conv_d_forward.1} parent=39 // pred_fallthru
          _
      $region40: #{conv_d_forward.1} parent=5 // pred_fallthru
        _
    $region6: #{conv_d_forward.1} parent=1 // loop_footer
      %s16 = sadd.s32 1, %s12
    $region7: #{conv_d_forward.1} parent=1 // loop_footer_branch
      %11 = sbr.rel target = $region3
    $region8: #{conv_d_forward.1} parent=1 // loop_exit
      _
    %329 = vsyncpa [#allocation4], 1
    %s330 = scalar_lea.sflag [#allocation4], 1
    %331 = vsyncpa %s330, 1

</llo_original>
